<compile_context>
chip_gen: v5e
topology: v5e:2x2
jax: 0.10.0
libtpu: 0.0.40
codegen_flags: <defaults>
</compile_context>

<pallas_src>
import functools

import jax
import jax.numpy as jnp
from jax import lax
from jax.experimental import pallas as pl
from jax.experimental.pallas import tpu as pltpu

_LANES = 128
_TILE_R = 1024          # row tile (multiple of 8) for the large-shape grid path
_SMALL_ROWS = 2048      # <= 2048*128*4 B = 1 MiB input -> single block, no grid


def affine_tanh_kernel(wb_ref, x_ref, o_ref):
    # wb_ref: (2,) [weight, bias] scalars in SMEM.
    # x_ref / o_ref: lane-dense (tile_rows, 128) VMEM blocks.
    w = wb_ref[0]
    b = wb_ref[1]
    o_ref[...] = jnp.tanh(x_ref[...] * w + b)


@jax.jit
def model_tanh_forward(x_nchw, weight, bias):
    """x_nchw: (1, 1, H, W) float32.  weight, bias: scalar float32 arrays.

    Returns (1, 1, H+2, W+2) float32, matching
      torch.tanh(Conv2d(1, 1, 1, padding=1)(x)).
    """
    n, c, h, w = x_nchw.shape
    assert n == 1 and c == 1, "ModelTanh uses a single in/out channel"

    w_scalar = jnp.asarray(weight, jnp.float32).reshape(())
    b_scalar = jnp.asarray(bias, jnp.float32).reshape(())
    wb_arr = jnp.stack([w_scalar, b_scalar])  # (2,) packed SMEM operand

    # Lane-dense interior: flatten H*W and view as (rows, 128).
    total = h * w
    flat = x_nchw.reshape(total)

    if total <= _SMALL_ROWS * _LANES:
        # ---- small-shape fast path: single full-array block, no grid ----
        # Only the lane dim must be 128; rows need not be a multiple of 8
        # because the block equals the full array.
        padded_total = ((total + _LANES - 1) // _LANES) * _LANES
        if padded_total != total:
            flat = jnp.pad(flat, (0, padded_total - total))
        rows = padded_total // _LANES
        x2d = flat.reshape(rows, _LANES)

        out2d = pl.pallas_call(
            affine_tanh_kernel,
            out_shape=jax.ShapeDtypeStruct((rows, _LANES), jnp.float32),
            in_specs=[
                pl.BlockSpec(memory_space=pltpu.SMEM),         # (2,) [w, b]
                pl.BlockSpec((rows, _LANES), lambda: (0, 0)),  # full slab
            ],
            out_specs=pl.BlockSpec((rows, _LANES), lambda: (0, 0)),
        )(wb_arr, x2d)
    else:
        # ---- large-shape path: row-tiled, pipelined, core-parallel grid ----
        chunk = _TILE_R * _LANES
        padded_total = ((total + chunk - 1) // chunk) * chunk
        if padded_total != total:
            flat = jnp.pad(flat, (0, padded_total - total))
        rows = padded_total // _LANES
        x2d = flat.reshape(rows, _LANES)
        grid = (rows // _TILE_R,)

        out2d = pl.pallas_call(
            affine_tanh_kernel,
            out_shape=jax.ShapeDtypeStruct((rows, _LANES), jnp.float32),
            grid=grid,
            in_specs=[
                pl.BlockSpec(memory_space=pltpu.SMEM),               # (2,) [w, b]
                pl.BlockSpec((_TILE_R, _LANES), lambda i: (i, 0)),   # row tile
            ],
            out_specs=pl.BlockSpec((_TILE_R, _LANES), lambda i: (i, 0)),
            compiler_params=pltpu.CompilerParams(
                dimension_semantics=("parallel",)),
        )(wb_arr, x2d)

    # Keep the [:total] slice: any padded tail (tanh(bias) values) is dropped.
    interior = out2d.reshape(padded_total)[:total].reshape(h, w)

    # Border from padding=1: conv(0) = bias, so every border pixel is
    # tanh(bias).  full + dynamic_update_slice fuses into a single trailing
    # XLA kernel under the enclosing jit.
    border_val = jnp.tanh(b_scalar)
    out_full = jnp.full((h + 2, w + 2), border_val, jnp.float32)
    out_padded = lax.dynamic_update_slice(out_full, interior, (1, 1))
    return out_padded[None, None, :, :]


if __name__ == "__main__":
    key = jax.random.PRNGKey(0)
    kx, kw, kb, kx2 = jax.random.split(key, 4)

    # Input consistent with the module's forward: (N=1, C=1, H=2240, W=16).
    x = jax.random.normal(kx, (1, 1, 2240, 16), dtype=jnp.float32)

    # Deterministic synthetic parameters for Conv2d(1, 1, 1): scalar weight & bias.
    weight = jax.random.normal(kw, (), dtype=jnp.float32) * 0.5
    bias = jax.random.normal(kb, (), dtype=jnp.float32) * 0.1

    out = model_tanh_forward(x, weight, bias)
    out = jax.block_until_ready(out)

    # Reference check in plain JAX (padded-slab formulation of the same conv).
    ref = jnp.tanh(jnp.pad(x[0, 0], ((1, 1), (1, 1))) * weight + bias)[None, None]
    assert out.shape == (1, 1, 2242, 18), out.shape
    assert jnp.allclose(out, ref, atol=1e-5), float(jnp.abs(out - ref).max())

    # Also exercise the large-shape (row-tiled, parallel-grid) path once.
    x_big = jax.random.normal(kx2, (1, 1, 4096, 128), dtype=jnp.float32)
    out_big = jax.block_until_ready(model_tanh_forward(x_big, weight, bias))
    ref_big = jnp.tanh(
        jnp.pad(x_big[0, 0], ((1, 1), (1, 1))) * weight + bias)[None, None]
    assert out_big.shape == (1, 1, 4098, 130), out_big.shape
    assert jnp.allclose(out_big, ref_big, atol=1e-5), float(
        jnp.abs(out_big - ref_big).max())

    print("KERNEL_OK")
</pallas_src>

<mosaic_0001>
module attributes {stable_mosaic.version = 11 : i64} {
  func.func @affine_tanh_kernel(%arg0: memref<2xf32, #tpu.memory_space<smem>>, %arg1: memref<280x128xf32, #tpu.memory_space<vmem>>, %arg2: memref<280x128xf32, #tpu.memory_space<vmem>>) attributes {dimension_semantics = [], scalar_prefetch = 0 : i64, scratch_operands = 0 : i64, tpu.core_type = #tpu.core_type<tc>} {
    %c0 = arith.constant 0 : index
    %0 = memref.load %arg0[%c0] : memref<2xf32, #tpu.memory_space<smem>>
    %c1 = arith.constant 1 : index
    %1 = memref.load %arg0[%c1] : memref<2xf32, #tpu.memory_space<smem>>
    %c0_0 = arith.constant 0 : index
    %c0_1 = arith.constant 0 : index
    %2 = vector.load %arg1[%c0_0, %c0_1] : memref<280x128xf32, #tpu.memory_space<vmem>>, vector<280x128xf32>
    %3 = vector.broadcast %0 : f32 to vector<280x128xf32>
    %4 = arith.mulf %2, %3 : vector<280x128xf32>
    %5 = vector.broadcast %1 : f32 to vector<280x128xf32>
    %6 = arith.addf %4, %5 : vector<280x128xf32>
    %7 = math.tanh %6 : vector<280x128xf32>
    %c0_2 = arith.constant 0 : index
    %c0_3 = arith.constant 0 : index
    %8 = vector.load %arg2[%c0_2, %c0_3] : memref<280x128xf32, #tpu.memory_space<vmem>>, vector<280x128xf32>
    tpu.vector_store %arg2[%c0_2, %c0_3], %7 {strides = array<i32>} : memref<280x128xf32, #tpu.memory_space<vmem>>, vector<280x128xf32>,
    return
  }
}

</mosaic_0001>

<llo_original>
// kernel: model_tanh_forward.1
$region0: #{model_tanh_forward.1}
  #allocation0 [shape = 'u32[]', space=smem, size = 0x4, offset = 0x4, fixed_abs, tag = 'smem constant byte address 0x4 - core index']
  #allocation1 [shape = 'u32[72,128]{1,0:T(1,128)}', space=vmem, size = 0x9000, scoped, tag = 'internal scratch']
  %s0 = inlined_call_operand.vmem [shape: f32[2], index: 0, kind: input, shape index: {}]
  %s1 = inlined_call_operand.vmem [shape: f32[280,128], index: 1, kind: input, shape index: {}]
  %s2 = inlined_call_operand.vmem [shape: f32[280,128], index: 2, kind: output, shape index: {}]
  %s3 = sld [smem:[#allocation0]]
  $region22: #{model_tanh_forward.1} parent=0
    _
  %s5 = ssub.s32 1, %s3
  %s6 = scalar_select 0, %s5, %s3
  $region1: #{model_tanh_forward.1} parent=0
    #allocation2 [shape = 'u8[512]{0}', space=smem, size = 0x200, scoped, tag = 'input window, operand 0, single buffered']
    #allocation3 [shape = 's32[1]{0}', space=sflag, size = 0x4, scoped, tag = 'scoped memory for model_tanh_forward.1']
    %7 = vsyncpa [#allocation3], 0
    // Predicated region
    $region2: #{model_tanh_forward.1} parent=1 // pred_check
      _
    $region3: #{model_tanh_forward.1} parent=1 // pred_check_branch
      %9 = sbr.rel (0) target = $region5
    $region4: #{model_tanh_forward.1} parent=1 // pred_region
      %11 = vsyncadd [#allocation3], 0
      %s13 = sshll.u32 %s0, 4
      %s14 = int_to_ptr.vmem [resolvable:$true] %s13
      %16 = dma.vmem_to_smem %s14, 16, [#allocation2], [#allocation3]
    $region5: #{model_tanh_forward.1} parent=1 // pred_fallthru
      _
    // Predicated region
    $region6: #{model_tanh_forward.1} parent=1 // pred_check
      _
    $region7: #{model_tanh_forward.1} parent=1 // pred_check_branch
      %18 = sbr.rel (0) target = $region9
    $region8: #{model_tanh_forward.1} parent=1 // pred_region
      _
    $region9: #{model_tanh_forward.1} parent=1 // pred_fallthru
      _
    // Predicated region
    $region10: #{model_tanh_forward.1} parent=1 // pred_check
      _
    $region11: #{model_tanh_forward.1} parent=1 // pred_check_branch
      %20 = sbr.rel (0) target = $region13
    $region12: #{model_tanh_forward.1} parent=1 // pred_region
      %22 = dma.done [#allocation3], 16
    $region13: #{model_tanh_forward.1} parent=1 // pred_fallthru
      _
    %23 = sfence
    %s24 = sld [smem:[#allocation2]]
    %s25 = sld [smem:[#allocation2 + $0x1]]
    %v26 = vld [vmem:[%s1] sm:$0xff]
    %v27 = vld [vmem:[%s1 + $0x8] sm:$0xff]
    %v28 = vld [vmem:[%s1 + $0x10] sm:$0xff]
    %v29 = vld [vmem:[%s1 + $0x18] sm:$0xff]
    %v30 = vld [vmem:[%s1 + $0x20] sm:$0xff]
    %v31 = vld [vmem:[%s1 + $0x28] sm:$0xff]
    %v32 = vld [vmem:[%s1 + $0x30] sm:$0xff]
    %v33 = vld [vmem:[%s1 + $0x38] sm:$0xff]
    %v34 = vld [vmem:[%s1 + $0x40] sm:$0xff]
    %v35 = vld [vmem:[%s1 + $0x48] sm:$0xff]
    %v36 = vld [vmem:[%s1 + $0x50] sm:$0xff]
    %v37 = vld [vmem:[%s1 + $0x58] sm:$0xff]
    %v38 = vld [vmem:[%s1 + $0x60] sm:$0xff]
    %v39 = vld [vmem:[%s1 + $0x68] sm:$0xff]
    %v40 = vld [vmem:[%s1 + $0x70] sm:$0xff]
    %v41 = vld [vmem:[%s1 + $0x78] sm:$0xff]
    %v42 = vld [vmem:[%s1 + $0x80] sm:$0xff]
    %v43 = vld [vmem:[%s1 + $0x88] sm:$0xff]
    %v44 = vld [vmem:[%s1 + $0x90] sm:$0xff]
    %v45 = vld [vmem:[%s1 + $0x98] sm:$0xff]
    %v46 = vld [vmem:[%s1 + $0xa0] sm:$0xff]
    %v47 = vld [vmem:[%s1 + $0xa8] sm:$0xff]
    %v48 = vld [vmem:[%s1 + $0xb0] sm:$0xff]
    %v49 = vld [vmem:[%s1 + $0xb8] sm:$0xff]
    %v50 = vld [vmem:[%s1 + $0xc0] sm:$0xff]
    %v51 = vld [vmem:[%s1 + $0xc8] sm:$0xff]
    %v52 = vld [vmem:[%s1 + $0xd0] sm:$0xff]
    %v53 = vld [vmem:[%s1 + $0xd8] sm:$0xff]
    %v54 = vld [vmem:[%s1 + $0xe0] sm:$0xff]
    %v55 = vld [vmem:[%s1 + $0xe8] sm:$0xff]
    %v56 = vld [vmem:[%s1 + $0xf0] sm:$0xff]
    %v57 = vld [vmem:[%s1 + $0xf8] sm:$0xff]
    %v58 = vld [vmem:[%s1 + $0x100] sm:$0xff]
    %v59 = vld [vmem:[%s1 + $0x108] sm:$0xff]
    %v60 = vld [vmem:[%s1 + $0x110] sm:$0xff]
    %v61 = vstv %s24
    %v62 = vmul.f32 %v26, %v61
    %v63 = vmul.f32 %v27, %v61
    %v64 = vmul.f32 %v28, %v61
    %v65 = vmul.f32 %v29, %v61
    %v66 = vmul.f32 %v30, %v61
    %v67 = vmul.f32 %v31, %v61
    %v68 = vmul.f32 %v32, %v61
    %v69 = vmul.f32 %v33, %v61
    %v70 = vmul.f32 %v34, %v61
    %v71 = vmul.f32 %v35, %v61
    %v72 = vmul.f32 %v36, %v61
    %v73 = vmul.f32 %v37, %v61
    %v74 = vmul.f32 %v38, %v61
    %v75 = vmul.f32 %v39, %v61
    %v76 = vmul.f32 %v40, %v61
    %v77 = vmul.f32 %v41, %v61
    %v78 = vmul.f32 %v42, %v61
    %v79 = vmul.f32 %v43, %v61
    %v80 = vmul.f32 %v44, %v61
    %v81 = vmul.f32 %v45, %v61
    %v82 = vmul.f32 %v46, %v61
    %v83 = vmul.f32 %v47, %v61
    %v84 = vmul.f32 %v48, %v61
    %v85 = vmul.f32 %v49, %v61
    %v86 = vmul.f32 %v50, %v61
    %v87 = vmul.f32 %v51, %v61
    %v88 = vmul.f32 %v52, %v61
    %v89 = vmul.f32 %v53, %v61
    %v90 = vmul.f32 %v54, %v61
    %v91 = vmul.f32 %v55, %v61
    %v92 = vmul.f32 %v56, %v61
    %v93 = vmul.f32 %v57, %v61
    %v94 = vmul.f32 %v58, %v61
    %v95 = vmul.f32 %v59, %v61
    %v96 = vmul.f32 %v60, %v61
    %v97 = vstv %s25
    %v98 = vadd.f32 %v62, %v97
    %v99 = vadd.f32 %v63, %v97
    %v100 = vadd.f32 %v64, %v97
    %v101 = vadd.f32 %v65, %v97
    %v102 = vadd.f32 %v66, %v97
    %v103 = vadd.f32 %v67, %v97
    %v104 = vadd.f32 %v68, %v97
    %v105 = vadd.f32 %v69, %v97
    %v106 = vadd.f32 %v70, %v97
    %v107 = vadd.f32 %v71, %v97
    %v108 = vadd.f32 %v72, %v97
    %v109 = vadd.f32 %v73, %v97
    %v110 = vadd.f32 %v74, %v97
    %v111 = vadd.f32 %v75, %v97
    %v112 = vadd.f32 %v76, %v97
    %v113 = vadd.f32 %v77, %v97
    %v114 = vadd.f32 %v78, %v97
    %v115 = vadd.f32 %v79, %v97
    %v116 = vadd.f32 %v80, %v97
    %v117 = vadd.f32 %v81, %v97
    %v118 = vadd.f32 %v82, %v97
    %v119 = vadd.f32 %v83, %v97
    %v120 = vadd.f32 %v84, %v97
    %v121 = vadd.f32 %v85, %v97
    %v122 = vadd.f32 %v86, %v97
    %v123 = vadd.f32 %v87, %v97
    %v124 = vadd.f32 %v88, %v97
    %v125 = vadd.f32 %v89, %v97
    %v126 = vadd.f32 %v90, %v97
    %v127 = vadd.f32 %v91, %v97
    %v128 = vadd.f32 %v92, %v97
    %v129 = vadd.f32 %v93, %v97
    %v130 = vadd.f32 %v94, %v97
    %v131 = vadd.f32 %v95, %v97
    %v132 = vadd.f32 %v96, %v97
    %v133 = vtanh.pop %v98
    %v134 = vtanh.pop %v99
    %v135 = vtanh.pop %v100
    %v136 = vtanh.pop %v101
    %v137 = vtanh.pop %v102
    %v138 = vtanh.pop %v103
    %v139 = vtanh.pop %v104
    %v140 = vtanh.pop %v105
    %v141 = vtanh.pop %v106
    %v142 = vtanh.pop %v107
    %v143 = vtanh.pop %v108
    %v144 = vtanh.pop %v109
    %v145 = vtanh.pop %v110
    %v146 = vtanh.pop %v111
    %v147 = vtanh.pop %v112
    %v148 = vtanh.pop %v113
    %v149 = vtanh.pop %v114
    %v150 = vtanh.pop %v115
    %v151 = vtanh.pop %v116
    %v152 = vtanh.pop %v117
    %v153 = vtanh.pop %v118
    %v154 = vtanh.pop %v119
    %v155 = vtanh.pop %v120
    %v156 = vtanh.pop %v121
    %v157 = vtanh.pop %v122
    %v158 = vtanh.pop %v123
    %v159 = vtanh.pop %v124
    %v160 = vtanh.pop %v125
    %v161 = vtanh.pop %v126
    %v162 = vtanh.pop %v127
    %v163 = vtanh.pop %v128
    %v164 = vtanh.pop %v129
    %v165 = vtanh.pop %v130
    %v166 = vtanh.pop %v131
    %v167 = vtanh.pop %v132
    %168 = vst [vmem:[%s2] sm:$0xff] %v133
    %169 = vst [vmem:[%s2 + $0x8] sm:$0xff] %v134
    %170 = vst [vmem:[%s2 + $0x10] sm:$0xff] %v135
    %171 = vst [vmem:[%s2 + $0x18] sm:$0xff] %v136
    %172 = vst [vmem:[%s2 + $0x20] sm:$0xff] %v137
    %173 = vst [vmem:[%s2 + $0x28] sm:$0xff] %v138
    %174 = vst [vmem:[%s2 + $0x30] sm:$0xff] %v139
    %175 = vst [vmem:[%s2 + $0x38] sm:$0xff] %v140
    %176 = vst [vmem:[%s2 + $0x40] sm:$0xff] %v141
    %177 = vst [vmem:[%s2 + $0x48] sm:$0xff] %v142
    %178 = vst [vmem:[%s2 + $0x50] sm:$0xff] %v143
    %179 = vst [vmem:[%s2 + $0x58] sm:$0xff] %v144
    %180 = vst [vmem:[%s2 + $0x60] sm:$0xff] %v145
    %181 = vst [vmem:[%s2 + $0x68] sm:$0xff] %v146
    %182 = vst [vmem:[%s2 + $0x70] sm:$0xff] %v147
    %183 = vst [vmem:[%s2 + $0x78] sm:$0xff] %v148
    %184 = vst [vmem:[%s2 + $0x80] sm:$0xff] %v149
    %185 = vst [vmem:[%s2 + $0x88] sm:$0xff] %v150
    %186 = vst [vmem:[%s2 + $0x90] sm:$0xff] %v151
    %187 = vst [vmem:[%s2 + $0x98] sm:$0xff] %v152
    %188 = vst [vmem:[%s2 + $0xa0] sm:$0xff] %v153
    %189 = vst [vmem:[%s2 + $0xa8] sm:$0xff] %v154
    %190 = vst [vmem:[%s2 + $0xb0] sm:$0xff] %v155
    %191 = vst [vmem:[%s2 + $0xb8] sm:$0xff] %v156
    %192 = vst [vmem:[%s2 + $0xc0] sm:$0xff] %v157
    %193 = vst [vmem:[%s2 + $0xc8] sm:$0xff] %v158
    %194 = vst [vmem:[%s2 + $0xd0] sm:$0xff] %v159
    %195 = vst [vmem:[%s2 + $0xd8] sm:$0xff] %v160
    %196 = vst [vmem:[%s2 + $0xe0] sm:$0xff] %v161
    %197 = vst [vmem:[%s2 + $0xe8] sm:$0xff] %v162
    %198 = vst [vmem:[%s2 + $0xf0] sm:$0xff] %v163
    %199 = vst [vmem:[%s2 + $0xf8] sm:$0xff] %v164
    %200 = vst [vmem:[%s2 + $0x100] sm:$0xff] %v165
    %201 = vst [vmem:[%s2 + $0x108] sm:$0xff] %v166
    %202 = vst [vmem:[%s2 + $0x110] sm:$0xff] %v167
    // Predicated region
    $region14: #{model_tanh_forward.1} parent=1 // pred_check
      _
    $region15: #{model_tanh_forward.1} parent=1 // pred_check_branch
      %204 = sbr.rel (0) target = $region17
    $region16: #{model_tanh_forward.1} parent=1 // pred_region
      _
    $region17: #{model_tanh_forward.1} parent=1 // pred_fallthru
      _
    // Predicated region
    $region18: #{model_tanh_forward.1} parent=1 // pred_check
      _
    $region19: #{model_tanh_forward.1} parent=1 // pred_check_branch
      %206 = sbr.rel (0) target = $region21
    $region20: #{model_tanh_forward.1} parent=1 // pred_region
      _
    $region21: #{model_tanh_forward.1} parent=1 // pred_fallthru
      _
    %207 = vsyncpa [#allocation3], 1

</llo_original>
